<compile_context>
chip_gen: v7x
topology: tpu7x:2x2x1
jax: 0.10.0
libtpu: 0.0.40
codegen_flags: <defaults>
</compile_context>

<pallas_src>
import jax
import jax.numpy as jnp
from jax import lax
from jax.experimental import pallas as pl
from jax.experimental.pallas import tpu as pltpu

_EPS = 1e-6
_MAX_LANE_WIDTH = 1024       # folded lane width cap (the (5,W) accumulator is tiny)
_SMALL_BYTES = 512 * 1024    # below this, plain XLA wins (launch/step overhead)
_N_PAR = 2                   # leading 'parallel' axis: shards stream across v7x's 2 TCs


def _round_up(x, m):
    return ((x + m - 1) // m) * m


def _per_input_block_bytes():
    """Generation-aware per-input-block VMEM budget (x2 inputs x2 pipeline bufs)."""
    try:
        kind = jax.devices()[0].device_kind.lower()
    except Exception:
        return 2 << 20
    if "v5 lite" in kind or "v5lite" in kind or "v5e" in kind:
        return 2 << 20       # 16 MiB default scoped VMEM on v5e: stay well clear
    if "v7" in kind:
        return 6 << 20       # 3.2 TB/s HBM -> amortize 0.35us/step; 64 MiB VMEM ok
    return 4 << 20           # v6e / v5p / default


def _make_kernel(t2_total, tile_t, steps, grid_t, ragged):
    """Streaming accumulation of per-column {sum p, sum l, sum pl, sum pp, sum ll}."""

    def kernel(p_ref, l_ref, p0_ref, l0_ref, acc_ref):
        c = pl.program_id(0)   # parallel (core) axis
        t = pl.program_id(1)   # reduction axis

        @pl.when(t == 0)
        def _init():
            acc_ref[...] = jnp.zeros_like(acc_ref)

        # Pilot (first-sample) centering: exact (Pearson is shift-invariant per
        # column) and kills cancellation in the single-pass moment formulas.
        p = p_ref[...].astype(jnp.float32) - p0_ref[...].astype(jnp.float32)
        l = l_ref[...].astype(jnp.float32) - l0_ref[...].astype(jnp.float32)

        def accum(p, l):
            # TODO(synk): if a v7x bundle dump shows the VALU slot binding, move
            # these column sums onto the idle MXU slot via ones-row matmuls.
            acc_ref[0:1, :] += jnp.sum(p, axis=0, keepdims=True)
            acc_ref[1:2, :] += jnp.sum(l, axis=0, keepdims=True)
            acc_ref[2:3, :] += jnp.sum(p * l, axis=0, keepdims=True)
            acc_ref[3:4, :] += jnp.sum(p * p, axis=0, keepdims=True)
            acc_ref[4:5, :] += jnp.sum(l * l, axis=0, keepdims=True)

        if ragged:  # static flag: only emitted when the grid over-covers T2
            g = c * steps + t
            needs_mask = (g + 1) * tile_t > t2_total

            @pl.when(jnp.logical_not(needs_mask))
            def _fast():                       # steady-state: no mask ops
                accum(p, l)

            @pl.when(needs_mask)
            def _masked():                     # last real tile and phantom tiles
                rows = g * tile_t + lax.broadcasted_iota(jnp.int32, p.shape, 0)
                valid = rows < t2_total
                accum(jnp.where(valid, p, 0.0), jnp.where(valid, l, 0.0))
        else:
            accum(p, l)

    return kernel


def _neg_pearson_reference(preds, labels, eps=_EPS):
    """Pure-JAX two-pass centered formulation (also the small-input fast path)."""
    T = preds.shape[0]
    p = preds.reshape(T, -1).astype(jnp.float32)
    l = labels.reshape(T, -1).astype(jnp.float32)
    p = p - p.mean(axis=0, keepdims=True)
    l = l - l.mean(axis=0, keepdims=True)
    dot = jnp.sum(p * l, axis=0)
    denom = jnp.maximum(jnp.sqrt(jnp.sum(p * p, axis=0)) *
                        jnp.sqrt(jnp.sum(l * l, axis=0)), eps)
    return jnp.mean(1.0 - dot / denom)


def neg_pearson(preds, labels, *, use_pallas=None, fold=True, tile_rows=None,
                max_lane_width=_MAX_LANE_WIDTH):
    """Negative Pearson loss; reduction over dim 0. Matches the PyTorch module."""
    assert preds.shape == labels.shape
    T = preds.shape[0]
    if use_pallas is None:
        use_pallas = preds.size * 4 >= _SMALL_BYTES
    if not use_pallas or T < 2:
        return _neg_pearson_reference(preds, labels)

    preds2 = preds.reshape(T, -1)
    labels2 = labels.reshape(T, -1)
    B = preds2.shape[1]
    p_pilot = preds2[0:1, :]
    l_pilot = labels2[0:1, :]

    # ---- lane-dense fold: (T, B) -> (T2, K*B) (free row-major relabel) ----
    K, pad = 1, 0
    if fold and B < 128:
        kmax = max(1, min(T, max_lane_width // max(B, 1)))
        kmin = min(kmax, max(1, -(-128 // B)))            # ceil(128/B)
        K = 0
        for k in range(kmax, kmin - 1, -1):
            if T % k == 0:
                K = k
                break
        if K == 0:
            # No divisor yields a lane-dense width: fold anyway and pad the tiny
            # (<K row) tail with the pilot row -> exactly zero after centering.
            K = kmax
            pad = _round_up(T, K) - T
    if pad:
        preds2 = jnp.concatenate(
            [preds2, jnp.broadcast_to(p_pilot, (pad, B))], axis=0)
        labels2 = jnp.concatenate(
            [labels2, jnp.broadcast_to(l_pilot, (pad, B))], axis=0)
    T2 = (T + pad) // K
    W = K * B
    p2 = preds2.reshape(T2, W)
    l2 = labels2.reshape(T2, W)
    p0f = jnp.tile(p_pilot, (1, K))   # (1, W): per-ORIGINAL-column pilot, fold-broadcast
    l0f = jnp.tile(l_pilot, (1, K))

    # ---- tile sizing from VMEM budget using the 128-lane-padded width ----
    Wp = _round_up(max(W, 128), 128)
    if tile_rows is None:
        block_bytes = _per_input_block_bytes()
        tile_rows = max(8, (block_bytes // (4 * Wp)) // 8 * 8)
    if tile_rows >= T2:
        tile_t = T2                                        # full dim -> always legal
    else:
        tile_t = min(T2, max(8, (tile_rows // 8) * 8))
    grid_t = pl.cdiv(T2, tile_t)
    n_par = _N_PAR if grid_t >= 2 else 1
    steps = pl.cdiv(grid_t, n_par)
    ragged = (steps * n_par * tile_t) != T2                # partial/phantom tiles exist

    clamp = grid_t - 1

    def in_map(c, t):
        return (jnp.minimum(c * steps + t, clamp), 0)      # phantom cells reuse last block

    in_spec = pl.BlockSpec((tile_t, W), in_map)
    pilot_spec = pl.BlockSpec((1, W), lambda c, t: (0, 0))
    out_spec = pl.BlockSpec((None, 5, W), lambda c, t: (c, 0, 0))  # per-core resident acc

    blk_bytes = tile_t * Wp * 4
    vmem_limit = int(min(64 << 20, max(16 << 20, 4 * blk_bytes + (6 << 20))))

    stats = pl.pallas_call(
        _make_kernel(T2, tile_t, steps, grid_t, ragged),
        out_shape=jax.ShapeDtypeStruct((n_par, 5, W), jnp.float32),
        grid_spec=pltpu.PrefetchScalarGridSpec(
            num_scalar_prefetch=0,
            grid=(n_par, steps),
            in_specs=[in_spec, in_spec, pilot_spec, pilot_spec],
            out_specs=out_spec,
        ),
        compiler_params=pltpu.CompilerParams(
            dimension_semantics=("parallel", "arbitrary"),
            vmem_limit_bytes=vmem_limit,
        ),
    )(p2, l2, p0f, l0f)

    # ---- O(B) epilogue: combine cores, recombine folds, finish Pearson ----
    s = stats.sum(axis=0)                  # (5, W)   combine TensorCore partials
    s = s.reshape(5, K, B).sum(axis=1)     # (5, B)   recombine fold slots
    s_p, s_l, s_pl, s_pp, s_ll = s
    t_f = jnp.float32(T)
    dot = s_pl - s_p * s_l / t_f           # sum((p - pbar)(l - lbar))
    var_p = jnp.maximum(s_pp - s_p * s_p / t_f, 0.0)
    var_l = jnp.maximum(s_ll - s_l * s_l / t_f, 0.0)
    # torch: denom = max(||p||*||l||, eps) == sqrt(max(var_p*var_l, eps^2))
    cos = dot * lax.rsqrt(jnp.maximum(var_p * var_l, jnp.float32(_EPS) ** 2))
    return jnp.mean(1.0 - cos)


if __name__ == "__main__":
    key = jax.random.PRNGKey(0)
    k1, k2, k3, k4, k5, k6 = jax.random.split(key, 6)

    # 1) rPPG-style (T, B): lane-dense divisor fold, single grid step.
    T, B = 512, 8
    preds = jax.random.normal(k1, (T, B), dtype=jnp.float32)
    labels = 0.5 * preds + jax.random.normal(k2, (T, B), dtype=jnp.float32)
    loss = neg_pearson(preds, labels, use_pallas=True)
    jax.block_until_ready(loss)
    ref = _neg_pearson_reference(preds, labels)
    assert jnp.allclose(loss, ref, atol=3e-5, rtol=3e-5), (loss, ref)

    # 2) Pad-fold + multi-step + ragged last tile + parallel (dual-core) axis,
    #    large-mean signals (exercises pilot centering precision).
    T2_, B2_ = 1000, 8
    p_b = 10.0 + 0.5 * jax.random.normal(k3, (T2_, B2_), dtype=jnp.float32)
    l_b = 5.0 + 0.3 * (p_b - 10.0) + 0.2 * jax.random.normal(k4, (T2_, B2_), dtype=jnp.float32)
    loss2 = neg_pearson(p_b, l_b, use_pallas=True, tile_rows=24, max_lane_width=128)
    jax.block_until_ready(loss2)
    ref2 = _neg_pearson_reference(p_b, l_b)
    assert jnp.allclose(loss2, ref2, atol=1e-4, rtol=1e-4), (loss2, ref2)

    # 3) Small-input auto fallback (pure XLA path).
    p_s = jax.random.normal(k5, (64, 4), dtype=jnp.float32)
    l_s = jax.random.normal(k6, (64, 4), dtype=jnp.float32)
    loss3 = neg_pearson(p_s, l_s)
    jax.block_until_ready(loss3)
    ref3 = _neg_pearson_reference(p_s, l_s)
    assert jnp.allclose(loss3, ref3, atol=1e-5, rtol=1e-5), (loss3, ref3)

    print("KERNEL_OK")
</pallas_src>

<mosaic_0001>
module attributes {stable_mosaic.version = 11 : i64} {
  func.func @kernel(%arg0: i32, %arg1: i32, %arg2: memref<4x1024xf32, #tpu.memory_space<vmem>>, %arg3: memref<4x1024xf32, #tpu.memory_space<vmem>>, %arg4: memref<1x1024xf32, #tpu.memory_space<vmem>>, %arg5: memref<1x1024xf32, #tpu.memory_space<vmem>>, %arg6: memref<1x5x1024xf32, #tpu.memory_space<vmem>>) attributes {dimension_semantics = [#tpu.dimension_semantics<parallel>, #tpu.dimension_semantics<arbitrary>], iteration_bounds = array<i64: 1, 1>, scalar_prefetch = 0 : i64, scratch_operands = 0 : i64, tpu.core_type = #tpu.core_type<tc>, window_params = [{transform_indices = @transform_0, window_bounds = array<i64: 4, 1024>}, {transform_indices = @transform_1, window_bounds = array<i64: 4, 1024>}, {pipeline_mode = #tpu.pipeline_mode<synchronous>, transform_indices = @transform_2, window_bounds = array<i64: 1, 1024>}, {pipeline_mode = #tpu.pipeline_mode<synchronous>, transform_indices = @transform_3, window_bounds = array<i64: 1, 1024>}, {transform_indices = @transform_4, window_bounds = array<i64: 1, 5, 1024>}]} {
    %c0_i32 = arith.constant 0 : i32
    %0 = arith.cmpi eq, %arg1, %c0_i32 : i32
    %1 = arith.extui %0 : i1 to i32
    %c0_i32_0 = arith.constant 0 : i32
    %2 = arith.cmpi ne, %1, %c0_i32_0 : i32
    scf.if %2 {
      %cst_38 = arith.constant 0.000000e+00 : f32
      %54 = vector.broadcast %cst_38 : f32 to vector<5x1024xf32>
      %c0_39 = arith.constant 0 : index
      %c0_40 = arith.constant 0 : index
      %c0_41 = arith.constant 0 : index
      %55 = vector.load %arg6[%c0_39, %c0_40, %c0_41] : memref<1x5x1024xf32, #tpu.memory_space<vmem>>, vector<1x5x1024xf32>
      %56 = vector.shape_cast %55 : vector<1x5x1024xf32> to vector<5x1024xf32>
      %57 = vector.shape_cast %54 : vector<5x1024xf32> to vector<1x5x1024xf32>
      tpu.vector_store %arg6[%c0_39, %c0_40, %c0_41], %57 {strides = array<i32>} : memref<1x5x1024xf32, #tpu.memory_space<vmem>>, vector<1x5x1024xf32>,
    } else {
    }
    %c0 = arith.constant 0 : index
    %c0_1 = arith.constant 0 : index
    %3 = vector.load %arg2[%c0, %c0_1] : memref<4x1024xf32, #tpu.memory_space<vmem>>, vector<4x1024xf32>
    %c0_2 = arith.constant 0 : index
    %c0_3 = arith.constant 0 : index
    %4 = vector.load %arg4[%c0_2, %c0_3] : memref<1x1024xf32, #tpu.memory_space<vmem>>, vector<1x1024xf32>
    %5 = vector.broadcast %4 : vector<1x1024xf32> to vector<4x1024xf32>
    %6 = arith.subf %3, %5 : vector<4x1024xf32>
    %c0_4 = arith.constant 0 : index
    %c0_5 = arith.constant 0 : index
    %7 = vector.load %arg3[%c0_4, %c0_5] : memref<4x1024xf32, #tpu.memory_space<vmem>>, vector<4x1024xf32>
    %c0_6 = arith.constant 0 : index
    %c0_7 = arith.constant 0 : index
    %8 = vector.load %arg5[%c0_6, %c0_7] : memref<1x1024xf32, #tpu.memory_space<vmem>>, vector<1x1024xf32>
    %9 = vector.broadcast %8 : vector<1x1024xf32> to vector<4x1024xf32>
    %10 = arith.subf %7, %9 : vector<4x1024xf32>
    %c0_8 = arith.constant 0 : index
    %c0_9 = arith.constant 0 : index
    %c0_10 = arith.constant 0 : index
    %11 = vector.load %arg6[%c0_8, %c0_9, %c0_10] : memref<1x5x1024xf32, #tpu.memory_space<vmem>>, vector<1x1x1024xf32>
    %12 = vector.shape_cast %11 : vector<1x1x1024xf32> to vector<1x1024xf32>
    %cst = arith.constant dense<0.000000e+00> : vector<1024xf32>
    %13 = vector.multi_reduction <add>, %6, %cst [0] : vector<4x1024xf32> to vector<1024xf32>
    %14 = vector.shape_cast %13 : vector<1024xf32> to vector<1x1024xf32>
    %15 = arith.addf %12, %14 : vector<1x1024xf32>
    %c0_11 = arith.constant 0 : index
    %c0_12 = arith.constant 0 : index
    %c0_13 = arith.constant 0 : index
    %16 = vector.load %arg6[%c0_11, %c0_12, %c0_13] : memref<1x5x1024xf32, #tpu.memory_space<vmem>>, vector<1x1x1024xf32>
    %17 = vector.shape_cast %16 : vector<1x1x1024xf32> to vector<1x1024xf32>
    %18 = vector.shape_cast %15 : vector<1x1024xf32> to vector<1x1x1024xf32>
    tpu.vector_store %arg6[%c0_11, %c0_12, %c0_13], %18 {strides = array<i32>} : memref<1x5x1024xf32, #tpu.memory_space<vmem>>, vector<1x1x1024xf32>,
    %c0_14 = arith.constant 0 : index
    %c1 = arith.constant 1 : index
    %c0_15 = arith.constant 0 : index
    %19 = vector.load %arg6[%c0_14, %c1, %c0_15] : memref<1x5x1024xf32, #tpu.memory_space<vmem>>, vector<1x1x1024xf32>
    %20 = vector.shape_cast %19 : vector<1x1x1024xf32> to vector<1x1024xf32>
    %cst_16 = arith.constant dense<0.000000e+00> : vector<1024xf32>
    %21 = vector.multi_reduction <add>, %10, %cst_16 [0] : vector<4x1024xf32> to vector<1024xf32>
    %22 = vector.shape_cast %21 : vector<1024xf32> to vector<1x1024xf32>
    %23 = arith.addf %20, %22 : vector<1x1024xf32>
    %c0_17 = arith.constant 0 : index
    %c1_18 = arith.constant 1 : index
    %c0_19 = arith.constant 0 : index
    %24 = vector.load %arg6[%c0_17, %c1_18, %c0_19] : memref<1x5x1024xf32, #tpu.memory_space<vmem>>, vector<1x1x1024xf32>
    %25 = vector.shape_cast %24 : vector<1x1x1024xf32> to vector<1x1024xf32>
    %26 = vector.shape_cast %23 : vector<1x1024xf32> to vector<1x1x1024xf32>
    tpu.vector_store %arg6[%c0_17, %c1_18, %c0_19], %26 {strides = array<i32>} : memref<1x5x1024xf32, #tpu.memory_space<vmem>>, vector<1x1x1024xf32>,
    %c0_20 = arith.constant 0 : index
    %c2 = arith.constant 2 : index
    %c0_21 = arith.constant 0 : index
    %27 = vector.load %arg6[%c0_20, %c2, %c0_21] : memref<1x5x1024xf32, #tpu.memory_space<vmem>>, vector<1x1x1024xf32>
    %28 = vector.shape_cast %27 : vector<1x1x1024xf32> to vector<1x1024xf32>
    %29 = arith.mulf %6, %10 : vector<4x1024xf32>
    %cst_22 = arith.constant dense<0.000000e+00> : vector<1024xf32>
    %30 = vector.multi_reduction <add>, %29, %cst_22 [0] : vector<4x1024xf32> to vector<1024xf32>
    %31 = vector.shape_cast %30 : vector<1024xf32> to vector<1x1024xf32>
    %32 = arith.addf %28, %31 : vector<1x1024xf32>
    %c0_23 = arith.constant 0 : index
    %c2_24 = arith.constant 2 : index
    %c0_25 = arith.constant 0 : index
    %33 = vector.load %arg6[%c0_23, %c2_24, %c0_25] : memref<1x5x1024xf32, #tpu.memory_space<vmem>>, vector<1x1x1024xf32>
    %34 = vector.shape_cast %33 : vector<1x1x1024xf32> to vector<1x1024xf32>
    %35 = vector.shape_cast %32 : vector<1x1024xf32> to vector<1x1x1024xf32>
    tpu.vector_store %arg6[%c0_23, %c2_24, %c0_25], %35 {strides = array<i32>} : memref<1x5x1024xf32, #tpu.memory_space<vmem>>, vector<1x1x1024xf32>,
    %c0_26 = arith.constant 0 : index
    %c3 = arith.constant 3 : index
    %c0_27 = arith.constant 0 : index
    %36 = vector.load %arg6[%c0_26, %c3, %c0_27] : memref<1x5x1024xf32, #tpu.memory_space<vmem>>, vector<1x1x1024xf32>
    %37 = vector.shape_cast %36 : vector<1x1x1024xf32> to vector<1x1024xf32>
    %38 = arith.mulf %6, %6 : vector<4x1024xf32>
    %cst_28 = arith.constant dense<0.000000e+00> : vector<1024xf32>
    %39 = vector.multi_reduction <add>, %38, %cst_28 [0] : vector<4x1024xf32> to vector<1024xf32>
    %40 = vector.shape_cast %39 : vector<1024xf32> to vector<1x1024xf32>
    %41 = arith.addf %37, %40 : vector<1x1024xf32>
    %c0_29 = arith.constant 0 : index
    %c3_30 = arith.constant 3 : index
    %c0_31 = arith.constant 0 : index
    %42 = vector.load %arg6[%c0_29, %c3_30, %c0_31] : memref<1x5x1024xf32, #tpu.memory_space<vmem>>, vector<1x1x1024xf32>
    %43 = vector.shape_cast %42 : vector<1x1x1024xf32> to vector<1x1024xf32>
    %44 = vector.shape_cast %41 : vector<1x1024xf32> to vector<1x1x1024xf32>
    tpu.vector_store %arg6[%c0_29, %c3_30, %c0_31], %44 {strides = array<i32>} : memref<1x5x1024xf32, #tpu.memory_space<vmem>>, vector<1x1x1024xf32>,
    %c0_32 = arith.constant 0 : index
    %c4 = arith.constant 4 : index
    %c0_33 = arith.constant 0 : index
    %45 = vector.load %arg6[%c0_32, %c4, %c0_33] : memref<1x5x1024xf32, #tpu.memory_space<vmem>>, vector<1x1x1024xf32>
    %46 = vector.shape_cast %45 : vector<1x1x1024xf32> to vector<1x1024xf32>
    %47 = arith.mulf %10, %10 : vector<4x1024xf32>
    %cst_34 = arith.constant dense<0.000000e+00> : vector<1024xf32>
    %48 = vector.multi_reduction <add>, %47, %cst_34 [0] : vector<4x1024xf32> to vector<1024xf32>
    %49 = vector.shape_cast %48 : vector<1024xf32> to vector<1x1024xf32>
    %50 = arith.addf %46, %49 : vector<1x1024xf32>
    %c0_35 = arith.constant 0 : index
    %c4_36 = arith.constant 4 : index
    %c0_37 = arith.constant 0 : index
    %51 = vector.load %arg6[%c0_35, %c4_36, %c0_37] : memref<1x5x1024xf32, #tpu.memory_space<vmem>>, vector<1x1x1024xf32>
    %52 = vector.shape_cast %51 : vector<1x1x1024xf32> to vector<1x1024xf32>
    %53 = vector.shape_cast %50 : vector<1x1024xf32> to vector<1x1x1024xf32>
    tpu.vector_store %arg6[%c0_35, %c4_36, %c0_37], %53 {strides = array<i32>} : memref<1x5x1024xf32, #tpu.memory_space<vmem>>, vector<1x1x1024xf32>,
    return
  }
  func.func @transform_0(%arg0: i32, %arg1: i32) -> (i32, i32) {
    %c1_i32 = arith.constant 1 : i32
    %0 = arith.muli %arg0, %c1_i32 : i32
    %1 = arith.addi %0, %arg1 : i32
    %c0_i32 = arith.constant 0 : i32
    %2 = arith.minsi %1, %c0_i32 : i32
    %c0_i32_0 = arith.constant 0 : i32
    %c0_i32_1 = arith.constant 0 : i32
    return %2, %c0_i32_0 : i32, i32
  }
  func.func @transform_1(%arg0: i32, %arg1: i32) -> (i32, i32) {
    %c1_i32 = arith.constant 1 : i32
    %0 = arith.muli %arg0, %c1_i32 : i32
    %1 = arith.addi %0, %arg1 : i32
    %c0_i32 = arith.constant 0 : i32
    %2 = arith.minsi %1, %c0_i32 : i32
    %c0_i32_0 = arith.constant 0 : i32
    %c0_i32_1 = arith.constant 0 : i32
    return %2, %c0_i32_0 : i32, i32
  }
  func.func @transform_2(%arg0: i32, %arg1: i32) -> (i32, i32) {
    %c0_i32 = arith.constant 0 : i32
    %c0_i32_0 = arith.constant 0 : i32
    %c0_i32_1 = arith.constant 0 : i32
    return %c0_i32, %c0_i32_0 : i32, i32
  }
  func.func @transform_3(%arg0: i32, %arg1: i32) -> (i32, i32) {
    %c0_i32 = arith.constant 0 : i32
    %c0_i32_0 = arith.constant 0 : i32
    %c0_i32_1 = arith.constant 0 : i32
    return %c0_i32, %c0_i32_0 : i32, i32
  }
  func.func @transform_4(%arg0: i32, %arg1: i32) -> (i32, i32, i32) {
    %c0_i32 = arith.constant 0 : i32
    %c0_i32_0 = arith.constant 0 : i32
    %c0_i32_1 = arith.constant 0 : i32
    return %arg0, %c0_i32, %c0_i32_0 : i32, i32, i32
  }
}

</mosaic_0001>

<llo_original>
// kernel: tpu_custom_call.1
$region0: #{tpu_custom_call.1}
  #allocation0 [shape = 'u32[]', space=smem, size = 0x4, offset = 0x4, fixed_abs, tag = 'smem constant byte address 0x4 - core index']
  #allocation1 [shape = 'u32[144,128]{1,0:T(1,128)}', space=vmem, size = 0x12000, scoped, tag = 'internal scratch']
  %s0 = inlined_call_operand.hbm [shape: f32[4,1024], index: 0, kind: input, shape index: {}]
  %s1 = inlined_call_operand.hbm [shape: f32[4,1024], index: 1, kind: input, shape index: {}]
  %s2 = inlined_call_operand.hbm [shape: f32[1,1024], index: 2, kind: input, shape index: {}]
  %s3 = inlined_call_operand.vmem [shape: f32[1,1024], index: 3, kind: input, shape index: {}]
  %s4 = inlined_call_operand.vmem [shape: f32[1,5,1024], index: 4, kind: output, shape index: {}]
  %s5 = sld [smem:[#allocation0]]
  $region42: #{tpu_custom_call.1} parent=0
    _
  %s7 = ssub.s32 1, %s5
  %s8 = scalar_select 0, %s7, %s5
  $region1: #{tpu_custom_call.1} parent=0
    #allocation2 [shape = 'u8[16384]{0}', space=vmem, size = 0x4000, scoped, tag = 'input window, operand 0, single buffered']
    #allocation3 [shape = 's32[1]{0}', space=sflag, size = 0x4, scoped, tag = 'scoped memory for tpu_custom_call.1']
    #allocation4 [shape = 'u8[16384]{0}', space=vmem, size = 0x4000, scoped, tag = 'input window, operand 1, single buffered']
    #allocation5 [shape = 's32[1]{0}', space=sflag, size = 0x4, scoped, tag = 'scoped memory for tpu_custom_call.1']
    #allocation6 [shape = 'u8[4096]{0}', space=vmem, size = 0x1000, scoped, tag = 'input window, operand 2, single buffered']
    %9 = vsyncpa [#allocation3], 0
    %10 = vsyncpa [#allocation5], 0
    // Predicated region
    $region2: #{tpu_custom_call.1} parent=1 // pred_check
      _
    $region3: #{tpu_custom_call.1} parent=1 // pred_check_branch
      %12 = sbr.rel (0) target = $region5
    $region4: #{tpu_custom_call.1} parent=1 // pred_region
      %s13 = sadd.s32 0, 0
      %p14 = scmp.lt.s32.totalorder %s13, 0
      %s15 = scalar_select %p14, %s13, 0
      %s17 = ssub.s32 512, 512
      %18 = vsyncadd [#allocation3], %s17
      %s19 = smul.addr %s15, 8
      %s20 = smul.addr %s19, 64
      %s21 = scalar_lea.hbm %s0, %s20
      %s23 = sshll.u32 [#allocation2], 4
      %s24 = int_to_ptr.vmem [resolvable:$true] %s23
      %26 = dma.hbm_to_vmem [thread:$0]  %s21, 512, %s24, [#allocation3]
    $region5: #{tpu_custom_call.1} parent=1 // pred_fallthru
      _
    // Predicated region
    $region6: #{tpu_custom_call.1} parent=1 // pred_check
      _
    $region7: #{tpu_custom_call.1} parent=1 // pred_check_branch
      %28 = sbr.rel (0) target = $region9
    $region8: #{tpu_custom_call.1} parent=1 // pred_region
      %s29 = sadd.s32 0, 0
      %p30 = scmp.lt.s32.totalorder %s29, 0
      %s31 = scalar_select %p30, %s29, 0
      %s33 = ssub.s32 512, 512
      %34 = vsyncadd [#allocation5], %s33
      %s35 = smul.addr %s31, 8
      %s36 = smul.addr %s35, 64
      %s37 = scalar_lea.hbm %s1, %s36
      %s39 = sshll.u32 [#allocation4], 4
      %s40 = int_to_ptr.vmem [resolvable:$true] %s39
      %42 = dma.hbm_to_vmem [thread:$0]  %s37, 512, %s40, [#allocation5]
    $region9: #{tpu_custom_call.1} parent=1 // pred_fallthru
      _
    // Predicated region
    $region10: #{tpu_custom_call.1} parent=1 // pred_check
      _
    $region11: #{tpu_custom_call.1} parent=1 // pred_check_branch
      %44 = sbr.rel (0) target = $region13
    $region12: #{tpu_custom_call.1} parent=1 // pred_region
      %s46 = ssub.s32 128, 128
      %47 = vsyncadd [#allocation5], %s46
      %s49 = sshll.u32 [#allocation6], 4
      %s50 = int_to_ptr.vmem [resolvable:$true] %s49
      %52 = dma.hbm_to_vmem [thread:$0]  %s2, 128, %s50, [#allocation5]
    $region13: #{tpu_custom_call.1} parent=1 // pred_fallthru
      _
    // Predicated region
    $region14: #{tpu_custom_call.1} parent=1 // pred_check
      _
    $region15: #{tpu_custom_call.1} parent=1 // pred_check_branch
      %54 = sbr.rel (0) target = $region17
    $region16: #{tpu_custom_call.1} parent=1 // pred_region
      _
    $region17: #{tpu_custom_call.1} parent=1 // pred_fallthru
      _
    // Predicated region
    $region18: #{tpu_custom_call.1} parent=1 // pred_check
      _
    $region19: #{tpu_custom_call.1} parent=1 // pred_check_branch
      %56 = sbr.rel (0) target = $region21
    $region20: #{tpu_custom_call.1} parent=1 // pred_region
      %57 = dma.done [#allocation3], 512
    $region21: #{tpu_custom_call.1} parent=1 // pred_fallthru
      _
    // Predicated region
    $region22: #{tpu_custom_call.1} parent=1 // pred_check
      _
    $region23: #{tpu_custom_call.1} parent=1 // pred_check_branch
      %59 = sbr.rel (0) target = $region25
    $region24: #{tpu_custom_call.1} parent=1 // pred_region
      %60 = dma.done [#allocation5], 512
    $region25: #{tpu_custom_call.1} parent=1 // pred_fallthru
      _
    // Predicated region
    $region26: #{tpu_custom_call.1} parent=1 // pred_check
      _
    $region27: #{tpu_custom_call.1} parent=1 // pred_check_branch
      %62 = sbr.rel (0) target = $region29
    $region28: #{tpu_custom_call.1} parent=1 // pred_region
      %63 = dma.done [#allocation5], 128
    $region29: #{tpu_custom_call.1} parent=1 // pred_fallthru
      _
    %s64 = sadd.s32 0, 0
    %p65 = scmp.lt.s32.totalorder %s64, 0
    %s66 = scalar_select %p65, %s64, 0
    %s67 = sadd.s32 0, 0
    %p68 = scmp.lt.s32.totalorder %s67, 0
    %s69 = scalar_select %p68, %s67, 0
    %p70 = scmp.eq.s32.totalorder 0, 0
    // Predicated region
    $region30: #{tpu_custom_call.1} parent=1 // pred_check
      %p71 = pneg %p70
    $region31: #{tpu_custom_call.1} parent=1 // pred_check_branch
      %73 = sbr.rel (%p71) target = $region33
    $region32: #{tpu_custom_call.1} parent=1 // pred_region
      %74 = vst [vmem:[%s4] sm:$0x1f] 0.0
      %75 = vst [vmem:[%s4 + $0x8] sm:$0x1f] 0.0
      %76 = vst [vmem:[%s4 + $0x10] sm:$0x1f] 0.0
      %77 = vst [vmem:[%s4 + $0x18] sm:$0x1f] 0.0
      %78 = vst [vmem:[%s4 + $0x20] sm:$0x1f] 0.0
      %79 = vst [vmem:[%s4 + $0x28] sm:$0x1f] 0.0
      %80 = vst [vmem:[%s4 + $0x30] sm:$0x1f] 0.0
      %81 = vst [vmem:[%s4 + $0x38] sm:$0x1f] 0.0
    $region33: #{tpu_custom_call.1} parent=1 // pred_fallthru
      _
    %v82 = vld [vmem:[#allocation2] sm:$0xff]
    %v83 = vld [vmem:[#allocation2 + $0x8] sm:$0xff]
    %v84 = vld [vmem:[#allocation2 + $0x10] sm:$0xff]
    %v85 = vld [vmem:[#allocation2 + $0x18] sm:$0xff]
    %v86 = vld [vmem:[#allocation6] sm:$0xff]
    %v88 = vlaneseq
    %v89 = vshrl.u32 %v88, 7
    %v90 = vsub.s32 0, %v89
    %v91 = vrot.slane %v86, %v90
    %v92 = vlaneseq
    %v93 = vshrl.u32 %v92, 7
    %v94 = vsub.s32 1, %v93
    %v95 = vrot.slane %v86, %v94
    %v96 = vlaneseq
    %v97 = vshrl.u32 %v96, 7
    %v98 = vsub.s32 2, %v97
    %v99 = vrot.slane %v86, %v98
    %v100 = vlaneseq
    %v101 = vshrl.u32 %v100, 7
    %v102 = vsub.s32 3, %v101
    %v103 = vrot.slane %v86, %v102
    %v104 = vlaneseq
    %v105 = vshrl.u32 %v104, 7
    %v106 = vsub.s32 4, %v105
    %v107 = vrot.slane %v86, %v106
    %v108 = vlaneseq
    %v109 = vshrl.u32 %v108, 7
    %v110 = vsub.s32 5, %v109
    %v111 = vrot.slane %v86, %v110
    %v112 = vlaneseq
    %v113 = vshrl.u32 %v112, 7
    %v114 = vsub.s32 6, %v113
    %v115 = vrot.slane %v86, %v114
    %v116 = vlaneseq
    %v117 = vshrl.u32 %v116, 7
    %v118 = vsub.s32 7, %v117
    %v119 = vrot.slane %v86, %v118
    %v120 = vcombine.low %v91, %v95
    %v121 = vcombine.low %v99, %v103
    %v122 = vcombine.low %v107, %v111
    %v123 = vcombine.low %v115, %v119
    %v128 = vsub.f32 %v82, %v120
    %v129 = vsub.f32 %v83, %v121
    %v130 = vsub.f32 %v84, %v122
    %v131 = vsub.f32 %v85, %v123
    %v132 = vld [vmem:[#allocation4] sm:$0xff]
    %v133 = vld [vmem:[#allocation4 + $0x8] sm:$0xff]
    %v134 = vld [vmem:[#allocation4 + $0x10] sm:$0xff]
    %v135 = vld [vmem:[#allocation4 + $0x18] sm:$0xff]
    %v136 = vld [vmem:[%s3] sm:$0xff]
    %v138 = vlaneseq
    %v139 = vshrl.u32 %v138, 7
    %v140 = vsub.s32 0, %v139
    %v141 = vrot.slane %v136, %v140
    %v142 = vlaneseq
    %v143 = vshrl.u32 %v142, 7
    %v144 = vsub.s32 1, %v143
    %v145 = vrot.slane %v136, %v144
    %v146 = vlaneseq
    %v147 = vshrl.u32 %v146, 7
    %v148 = vsub.s32 2, %v147
    %v149 = vrot.slane %v136, %v148
    %v150 = vlaneseq
    %v151 = vshrl.u32 %v150, 7
    %v152 = vsub.s32 3, %v151
    %v153 = vrot.slane %v136, %v152
    %v154 = vlaneseq
    %v155 = vshrl.u32 %v154, 7
    %v156 = vsub.s32 4, %v155
    %v157 = vrot.slane %v136, %v156
    %v158 = vlaneseq
    %v159 = vshrl.u32 %v158, 7
    %v160 = vsub.s32 5, %v159
    %v161 = vrot.slane %v136, %v160
    %v162 = vlaneseq
    %v163 = vshrl.u32 %v162, 7
    %v164 = vsub.s32 6, %v163
    %v165 = vrot.slane %v136, %v164
    %v166 = vlaneseq
    %v167 = vshrl.u32 %v166, 7
    %v168 = vsub.s32 7, %v167
    %v169 = vrot.slane %v136, %v168
    %v170 = vcombine.low %v141, %v145
    %v171 = vcombine.low %v149, %v153
    %v172 = vcombine.low %v157, %v161
    %v173 = vcombine.low %v165, %v169
    %v178 = vsub.f32 %v132, %v170
    %v179 = vsub.f32 %v133, %v171
    %v180 = vsub.f32 %v134, %v172
    %v181 = vsub.f32 %v135, %v173
    %v182 = vld [vmem:[%s4] ss:$8 sm:$0xf]
    %v183 = vld [vmem:[%s4] ss:$8 sm:$0xf0]
    %v184 = vor.u32 %v182, %v183
    %v189 = vcombine.high %v128, %v128
    %v190 = vcombine.high %v129, %v129
    %v191 = vcombine.high %v130, %v130
    %v192 = vcombine.high %v131, %v131
    %vm197 = vcmask 1043456
    %v198 = vsel %vm197, %v128, 0.0
    %v199 = vrot.slane %v198, 4
    %v200 = vadd.f32 %v198, %v199
    %v201 = vrot.slane %v200, 2
    %v202 = vadd.f32 %v200, %v201
    %v203 = vrot.slane %v202, 1
    %v204 = vadd.f32 %v202, %v203
    %v205 = vsel %vm197, %v189, 0.0
    %v206 = vrot.slane %v205, 4
    %v207 = vadd.f32 %v205, %v206
    %v208 = vrot.slane %v207, 2
    %v209 = vadd.f32 %v207, %v208
    %v210 = vrot.slane %v209, 1
    %v211 = vadd.f32 %v209, %v210
    %v212 = vsel %vm197, %v129, 0.0
    %v213 = vrot.slane %v212, 4
    %v214 = vadd.f32 %v212, %v213
    %v215 = vrot.slane %v214, 2
    %v216 = vadd.f32 %v214, %v215
    %v217 = vrot.slane %v216, 1
    %v218 = vadd.f32 %v216, %v217
    %v219 = vsel %vm197, %v190, 0.0
    %v220 = vrot.slane %v219, 4
    %v221 = vadd.f32 %v219, %v220
    %v222 = vrot.slane %v221, 2
    %v223 = vadd.f32 %v221, %v222
    %v224 = vrot.slane %v223, 1
    %v225 = vadd.f32 %v223, %v224
    %v226 = vsel %vm197, %v130, 0.0
    %v227 = vrot.slane %v226, 4
    %v228 = vadd.f32 %v226, %v227
    %v229 = vrot.slane %v228, 2
    %v230 = vadd.f32 %v228, %v229
    %v231 = vrot.slane %v230, 1
    %v232 = vadd.f32 %v230, %v231
    %v233 = vsel %vm197, %v191, 0.0
    %v234 = vrot.slane %v233, 4
    %v235 = vadd.f32 %v233, %v234
    %v236 = vrot.slane %v235, 2
    %v237 = vadd.f32 %v235, %v236
    %v238 = vrot.slane %v237, 1
    %v239 = vadd.f32 %v237, %v238
    %v240 = vsel %vm197, %v131, 0.0
    %v241 = vrot.slane %v240, 4
    %v242 = vadd.f32 %v240, %v241
    %v243 = vrot.slane %v242, 2
    %v244 = vadd.f32 %v242, %v243
    %v245 = vrot.slane %v244, 1
    %v246 = vadd.f32 %v244, %v245
    %v247 = vsel %vm197, %v192, 0.0
    %v248 = vrot.slane %v247, 4
    %v249 = vadd.f32 %v247, %v248
    %v250 = vrot.slane %v249, 2
    %v251 = vadd.f32 %v249, %v250
    %v252 = vrot.slane %v251, 1
    %v253 = vadd.f32 %v251, %v252
    %v262 = vcombine.low %v204, %v211
    %v263 = vcombine.low %v218, %v225
    %v264 = vcombine.low %v232, %v239
    %v265 = vcombine.low %v246, %v253
    %v267 = vunpack.c.l.s4 1966171168
    %v268 = vunpack.c.0.s8 %v267
    %v269 = vlaneseq
    %v270 = vshrl.u32 %v269, 7
    %v271 = vsub.s32 %v268, %v270
    %v272 = vrot.slane %v262, %v271
    %v274 = vunpack.c.l.s4 1966171168
    %v275 = vunpack.c.0.s8 %v274
    %v276 = vlaneseq
    %v277 = vshrl.u32 %v276, 7
    %v278 = vsub.s32 %v275, %v277
    %v279 = vrot.slane %v263, %v278
    %v281 = vunpack.c.l.s4 1966171168
    %v282 = vunpack.c.0.s8 %v281
    %v283 = vlaneseq
    %v284 = vshrl.u32 %v283, 7
    %v285 = vsub.s32 %v282, %v284
    %v286 = vrot.slane %v264, %v285
    %v288 = vunpack.c.l.s4 1966171168
    %v289 = vunpack.c.0.s8 %v288
    %v290 = vlaneseq
    %v291 = vshrl.u32 %v290, 7
    %v292 = vsub.s32 %v289, %v291
    %v293 = vrot.slane %v265, %v292
    %v294 = vcombine.low %v272, %v279
    %v295 = vcombine.low %v286, %v293
    %v297 = vunpack.c.l.s4 1966171168
    %v298 = vunpack.c.0.s8 %v297
    %v299 = vlaneseq
    %v300 = vshrl.u32 %v299, 7
    %v301 = vsub.s32 %v298, %v300
    %v302 = vrot.slane %v294, %v301
    %v304 = vunpack.c.l.s4 1966171168
    %v305 = vunpack.c.0.s8 %v304
    %v306 = vlaneseq
    %v307 = vshrl.u32 %v306, 7
    %v308 = vsub.s32 %v305, %v307
    %v309 = vrot.slane %v295, %v308
    %v310 = vcombine.low %v302, %v309
    %v312 = vadd.f32 %v184, %v310
    %313 = vst [vmem:[%s4] ss:$8 sm:$0xf] %v312
    %314 = vst [vmem:[%s4] ss:$8 sm:$0xf0] %v312
    %s315 = scalar_lea.vmem %s4, 1
    %v316 = vld [vmem:[%s315] ss:$8 sm:$0xf]
    %v317 = vld [vmem:[%s315] ss:$8 sm:$0xf0]
    %v318 = vor.u32 %v316, %v317
    %v323 = vcombine.high %v178, %v178
    %v324 = vcombine.high %v179, %v179
    %v325 = vcombine.high %v180, %v180
    %v326 = vcombine.high %v181, %v181
    %v331 = vsel %vm197, %v178, 0.0
    %v332 = vrot.slane %v331, 4
    %v333 = vadd.f32 %v331, %v332
    %v334 = vrot.slane %v333, 2
    %v335 = vadd.f32 %v333, %v334
    %v336 = vrot.slane %v335, 1
    %v337 = vadd.f32 %v335, %v336
    %v338 = vsel %vm197, %v323, 0.0
    %v339 = vrot.slane %v338, 4
    %v340 = vadd.f32 %v338, %v339
    %v341 = vrot.slane %v340, 2
    %v342 = vadd.f32 %v340, %v341
    %v343 = vrot.slane %v342, 1
    %v344 = vadd.f32 %v342, %v343
    %v345 = vsel %vm197, %v179, 0.0
    %v346 = vrot.slane %v345, 4
    %v347 = vadd.f32 %v345, %v346
    %v348 = vrot.slane %v347, 2
    %v349 = vadd.f32 %v347, %v348
    %v350 = vrot.slane %v349, 1
    %v351 = vadd.f32 %v349, %v350
    %v352 = vsel %vm197, %v324, 0.0
    %v353 = vrot.slane %v352, 4
    %v354 = vadd.f32 %v352, %v353
    %v355 = vrot.slane %v354, 2
    %v356 = vadd.f32 %v354, %v355
    %v357 = vrot.slane %v356, 1
    %v358 = vadd.f32 %v356, %v357
    %v359 = vsel %vm197, %v180, 0.0
    %v360 = vrot.slane %v359, 4
    %v361 = vadd.f32 %v359, %v360
    %v362 = vrot.slane %v361, 2
    %v363 = vadd.f32 %v361, %v362
    %v364 = vrot.slane %v363, 1
    %v365 = vadd.f32 %v363, %v364
    %v366 = vsel %vm197, %v325, 0.0
    %v367 = vrot.slane %v366, 4
    %v368 = vadd.f32 %v366, %v367
    %v369 = vrot.slane %v368, 2
    %v370 = vadd.f32 %v368, %v369
    %v371 = vrot.slane %v370, 1
    %v372 = vadd.f32 %v370, %v371
    %v373 = vsel %vm197, %v181, 0.0
    %v374 = vrot.slane %v373, 4
    %v375 = vadd.f32 %v373, %v374
    %v376 = vrot.slane %v375, 2
    %v377 = vadd.f32 %v375, %v376
    %v378 = vrot.slane %v377, 1
    %v379 = vadd.f32 %v377, %v378
    %v380 = vsel %vm197, %v326, 0.0
    %v381 = vrot.slane %v380, 4
    %v382 = vadd.f32 %v380, %v381
    %v383 = vrot.slane %v382, 2
    %v384 = vadd.f32 %v382, %v383
    %v385 = vrot.slane %v384, 1
    %v386 = vadd.f32 %v384, %v385
    %v395 = vcombine.low %v337, %v344
    %v396 = vcombine.low %v351, %v358
    %v397 = vcombine.low %v365, %v372
    %v398 = vcombine.low %v379, %v386
    %v400 = vunpack.c.l.s4 1966171168
    %v401 = vunpack.c.0.s8 %v400
    %v402 = vlaneseq
    %v403 = vshrl.u32 %v402, 7
    %v404 = vsub.s32 %v401, %v403
    %v405 = vrot.slane %v395, %v404
    %v407 = vunpack.c.l.s4 1966171168
    %v408 = vunpack.c.0.s8 %v407
    %v409 = vlaneseq
    %v410 = vshrl.u32 %v409, 7
    %v411 = vsub.s32 %v408, %v410
    %v412 = vrot.slane %v396, %v411
    %v414 = vunpack.c.l.s4 1966171168
    %v415 = vunpack.c.0.s8 %v414
    %v416 = vlaneseq
    %v417 = vshrl.u32 %v416, 7
    %v418 = vsub.s32 %v415, %v417
    %v419 = vrot.slane %v397, %v418
    %v421 = vunpack.c.l.s4 1966171168
    %v422 = vunpack.c.0.s8 %v421
    %v423 = vlaneseq
    %v424 = vshrl.u32 %v423, 7
    %v425 = vsub.s32 %v422, %v424
    %v426 = vrot.slane %v398, %v425
    %v427 = vcombine.low %v405, %v412
    %v428 = vcombine.low %v419, %v426
    %v430 = vunpack.c.l.s4 1966171168
    %v431 = vunpack.c.0.s8 %v430
    %v432 = vlaneseq
    %v433 = vshrl.u32 %v432, 7
    %v434 = vsub.s32 %v431, %v433
    %v435 = vrot.slane %v427, %v434
    %v437 = vunpack.c.l.s4 1966171168
    %v438 = vunpack.c.0.s8 %v437
    %v439 = vlaneseq
    %v440 = vshrl.u32 %v439, 7
    %v441 = vsub.s32 %v438, %v440
    %v442 = vrot.slane %v428, %v441
    %v443 = vcombine.low %v435, %v442
    %v445 = vadd.f32 %v318, %v443
    %446 = vst [vmem:[%s315] ss:$8 sm:$0xf] %v445
    %447 = vst [vmem:[%s315] ss:$8 sm:$0xf0] %v445
    %s448 = scalar_lea.vmem %s4, 2
    %v449 = vld [vmem:[%s448] ss:$8 sm:$0xf]
    %v450 = vld [vmem:[%s448] ss:$8 sm:$0xf0]
    %v451 = vor.u32 %v449, %v450
    %v452 = vmul.f32 %v128, %v178
    %v453 = vmul.f32 %v129, %v179
    %v454 = vmul.f32 %v130, %v180
    %v455 = vmul.f32 %v131, %v181
    %v460 = vcombine.high %v452, %v452
    %v461 = vcombine.high %v453, %v453
    %v462 = vcombine.high %v454, %v454
    %v463 = vcombine.high %v455, %v455
    %v468 = vsel %vm197, %v452, 0.0
    %v469 = vrot.slane %v468, 4
    %v470 = vadd.f32 %v468, %v469
    %v471 = vrot.slane %v470, 2
    %v472 = vadd.f32 %v470, %v471
    %v473 = vrot.slane %v472, 1
    %v474 = vadd.f32 %v472, %v473
    %v475 = vsel %vm197, %v460, 0.0
    %v476 = vrot.slane %v475, 4
    %v477 = vadd.f32 %v475, %v476
    %v478 = vrot.slane %v477, 2
    %v479 = vadd.f32 %v477, %v478
    %v480 = vrot.slane %v479, 1
    %v481 = vadd.f32 %v479, %v480
    %v482 = vsel %vm197, %v453, 0.0
    %v483 = vrot.slane %v482, 4
    %v484 = vadd.f32 %v482, %v483
    %v485 = vrot.slane %v484, 2
    %v486 = vadd.f32 %v484, %v485
    %v487 = vrot.slane %v486, 1
    %v488 = vadd.f32 %v486, %v487
    %v489 = vsel %vm197, %v461, 0.0
    %v490 = vrot.slane %v489, 4
    %v491 = vadd.f32 %v489, %v490
    %v492 = vrot.slane %v491, 2
    %v493 = vadd.f32 %v491, %v492
    %v494 = vrot.slane %v493, 1
    %v495 = vadd.f32 %v493, %v494
    %v496 = vsel %vm197, %v454, 0.0
    %v497 = vrot.slane %v496, 4
    %v498 = vadd.f32 %v496, %v497
    %v499 = vrot.slane %v498, 2
    %v500 = vadd.f32 %v498, %v499
    %v501 = vrot.slane %v500, 1
    %v502 = vadd.f32 %v500, %v501
    %v503 = vsel %vm197, %v462, 0.0
    %v504 = vrot.slane %v503, 4
    %v505 = vadd.f32 %v503, %v504
    %v506 = vrot.slane %v505, 2
    %v507 = vadd.f32 %v505, %v506
    %v508 = vrot.slane %v507, 1
    %v509 = vadd.f32 %v507, %v508
    %v510 = vsel %vm197, %v455, 0.0
    %v511 = vrot.slane %v510, 4
    %v512 = vadd.f32 %v510, %v511
    %v513 = vrot.slane %v512, 2
    %v514 = vadd.f32 %v512, %v513
    %v515 = vrot.slane %v514, 1
    %v516 = vadd.f32 %v514, %v515
    %v517 = vsel %vm197, %v463, 0.0
    %v518 = vrot.slane %v517, 4
    %v519 = vadd.f32 %v517, %v518
    %v520 = vrot.slane %v519, 2
    %v521 = vadd.f32 %v519, %v520
    %v522 = vrot.slane %v521, 1
    %v523 = vadd.f32 %v521, %v522
    %v532 = vcombine.low %v474, %v481
    %v533 = vcombine.low %v488, %v495
    %v534 = vcombine.low %v502, %v509
    %v535 = vcombine.low %v516, %v523
    %v537 = vunpack.c.l.s4 1966171168
    %v538 = vunpack.c.0.s8 %v537
    %v539 = vlaneseq
    %v540 = vshrl.u32 %v539, 7
    %v541 = vsub.s32 %v538, %v540
    %v542 = vrot.slane %v532, %v541
    %v544 = vunpack.c.l.s4 1966171168
    %v545 = vunpack.c.0.s8 %v544
    %v546 = vlaneseq
    %v547 = vshrl.u32 %v546, 7
    %v548 = vsub.s32 %v545, %v547
    %v549 = vrot.slane %v533, %v548
    %v551 = vunpack.c.l.s4 1966171168
    %v552 = vunpack.c.0.s8 %v551
    %v553 = vlaneseq
    %v554 = vshrl.u32 %v553, 7
    %v555 = vsub.s32 %v552, %v554
    %v556 = vrot.slane %v534, %v555
    %v558 = vunpack.c.l.s4 1966171168
    %v559 = vunpack.c.0.s8 %v558
    %v560 = vlaneseq
    %v561 = vshrl.u32 %v560, 7
    %v562 = vsub.s32 %v559, %v561
    %v563 = vrot.slane %v535, %v562
    %v564 = vcombine.low %v542, %v549
    %v565 = vcombine.low %v556, %v563
    %v567 = vunpack.c.l.s4 1966171168
    %v568 = vunpack.c.0.s8 %v567
    %v569 = vlaneseq
    %v570 = vshrl.u32 %v569, 7
    %v571 = vsub.s32 %v568, %v570
    %v572 = vrot.slane %v564, %v571
    %v574 = vunpack.c.l.s4 1966171168
    %v575 = vunpack.c.0.s8 %v574
    %v576 = vlaneseq
    %v577 = vshrl.u32 %v576, 7
    %v578 = vsub.s32 %v575, %v577
    %v579 = vrot.slane %v565, %v578
    %v580 = vcombine.low %v572, %v579
    %v582 = vadd.f32 %v451, %v580
    %583 = vst [vmem:[%s448] ss:$8 sm:$0xf] %v582
    %584 = vst [vmem:[%s448] ss:$8 sm:$0xf0] %v582
    %s585 = scalar_lea.vmem %s4, 3
    %v586 = vld [vmem:[%s585] ss:$8 sm:$0xf]
    %v587 = vld [vmem:[%s585] ss:$8 sm:$0xf0]
    %v588 = vor.u32 %v586, %v587
    %v589 = vmul.f32 %v128, %v128
    %v590 = vmul.f32 %v129, %v129
    %v591 = vmul.f32 %v130, %v130
    %v592 = vmul.f32 %v131, %v131
    %v597 = vcombine.high %v589, %v589
    %v598 = vcombine.high %v590, %v590
    %v599 = vcombine.high %v591, %v591
    %v600 = vcombine.high %v592, %v592
    %v605 = vsel %vm197, %v589, 0.0
    %v606 = vrot.slane %v605, 4
    %v607 = vadd.f32 %v605, %v606
    %v608 = vrot.slane %v607, 2
    %v609 = vadd.f32 %v607, %v608
    %v610 = vrot.slane %v609, 1
    %v611 = vadd.f32 %v609, %v610
    %v612 = vsel %vm197, %v597, 0.0
    %v613 = vrot.slane %v612, 4
    %v614 = vadd.f32 %v612, %v613
    %v615 = vrot.slane %v614, 2
    %v616 = vadd.f32 %v614, %v615
    %v617 = vrot.slane %v616, 1
    %v618 = vadd.f32 %v616, %v617
    %v619 = vsel %vm197, %v590, 0.0
    %v620 = vrot.slane %v619, 4
    %v621 = vadd.f32 %v619, %v620
    %v622 = vrot.slane %v621, 2
    %v623 = vadd.f32 %v621, %v622
    %v624 = vrot.slane %v623, 1
    %v625 = vadd.f32 %v623, %v624
    %v626 = vsel %vm197, %v598, 0.0
    %v627 = vrot.slane %v626, 4
    %v628 = vadd.f32 %v626, %v627
    %v629 = vrot.slane %v628, 2
    %v630 = vadd.f32 %v628, %v629
    %v631 = vrot.slane %v630, 1
    %v632 = vadd.f32 %v630, %v631
    %v633 = vsel %vm197, %v591, 0.0
    %v634 = vrot.slane %v633, 4
    %v635 = vadd.f32 %v633, %v634
    %v636 = vrot.slane %v635, 2
    %v637 = vadd.f32 %v635, %v636
    %v638 = vrot.slane %v637, 1
    %v639 = vadd.f32 %v637, %v638
    %v640 = vsel %vm197, %v599, 0.0
    %v641 = vrot.slane %v640, 4
    %v642 = vadd.f32 %v640, %v641
    %v643 = vrot.slane %v642, 2
    %v644 = vadd.f32 %v642, %v643
    %v645 = vrot.slane %v644, 1
    %v646 = vadd.f32 %v644, %v645
    %v647 = vsel %vm197, %v592, 0.0
    %v648 = vrot.slane %v647, 4
    %v649 = vadd.f32 %v647, %v648
    %v650 = vrot.slane %v649, 2
    %v651 = vadd.f32 %v649, %v650
    %v652 = vrot.slane %v651, 1
    %v653 = vadd.f32 %v651, %v652
    %v654 = vsel %vm197, %v600, 0.0
    %v655 = vrot.slane %v654, 4
    %v656 = vadd.f32 %v654, %v655
    %v657 = vrot.slane %v656, 2
    %v658 = vadd.f32 %v656, %v657
    %v659 = vrot.slane %v658, 1
    %v660 = vadd.f32 %v658, %v659
    %v669 = vcombine.low %v611, %v618
    %v670 = vcombine.low %v625, %v632
    %v671 = vcombine.low %v639, %v646
    %v672 = vcombine.low %v653, %v660
    %v674 = vunpack.c.l.s4 1966171168
    %v675 = vunpack.c.0.s8 %v674
    %v676 = vlaneseq
    %v677 = vshrl.u32 %v676, 7
    %v678 = vsub.s32 %v675, %v677
    %v679 = vrot.slane %v669, %v678
    %v681 = vunpack.c.l.s4 1966171168
    %v682 = vunpack.c.0.s8 %v681
    %v683 = vlaneseq
    %v684 = vshrl.u32 %v683, 7
    %v685 = vsub.s32 %v682, %v684
    %v686 = vrot.slane %v670, %v685
    %v688 = vunpack.c.l.s4 1966171168
    %v689 = vunpack.c.0.s8 %v688
    %v690 = vlaneseq
    %v691 = vshrl.u32 %v690, 7
    %v692 = vsub.s32 %v689, %v691
    %v693 = vrot.slane %v671, %v692
    %v695 = vunpack.c.l.s4 1966171168
    %v696 = vunpack.c.0.s8 %v695
    %v697 = vlaneseq
    %v698 = vshrl.u32 %v697, 7
    %v699 = vsub.s32 %v696, %v698
    %v700 = vrot.slane %v672, %v699
    %v701 = vcombine.low %v679, %v686
    %v702 = vcombine.low %v693, %v700
    %v704 = vunpack.c.l.s4 1966171168
    %v705 = vunpack.c.0.s8 %v704
    %v706 = vlaneseq
    %v707 = vshrl.u32 %v706, 7
    %v708 = vsub.s32 %v705, %v707
    %v709 = vrot.slane %v701, %v708
    %v711 = vunpack.c.l.s4 1966171168
    %v712 = vunpack.c.0.s8 %v711
    %v713 = vlaneseq
    %v714 = vshrl.u32 %v713, 7
    %v715 = vsub.s32 %v712, %v714
    %v716 = vrot.slane %v702, %v715
    %v717 = vcombine.low %v709, %v716
    %v719 = vadd.f32 %v588, %v717
    %720 = vst [vmem:[%s585] ss:$8 sm:$0xf] %v719
    %721 = vst [vmem:[%s585] ss:$8 sm:$0xf0] %v719
    %s722 = scalar_lea.vmem %s4, 4
    %v723 = vld [vmem:[%s722] ss:$8 sm:$0xf]
    %v724 = vld [vmem:[%s722] ss:$8 sm:$0xf0]
    %v725 = vor.u32 %v723, %v724
    %v726 = vmul.f32 %v178, %v178
    %v727 = vmul.f32 %v179, %v179
    %v728 = vmul.f32 %v180, %v180
    %v729 = vmul.f32 %v181, %v181
    %v734 = vcombine.high %v726, %v726
    %v735 = vcombine.high %v727, %v727
    %v736 = vcombine.high %v728, %v728
    %v737 = vcombine.high %v729, %v729
    %v742 = vsel %vm197, %v726, 0.0
    %v743 = vrot.slane %v742, 4
    %v744 = vadd.f32 %v742, %v743
    %v745 = vrot.slane %v744, 2
    %v746 = vadd.f32 %v744, %v745
    %v747 = vrot.slane %v746, 1
    %v748 = vadd.f32 %v746, %v747
    %v749 = vsel %vm197, %v734, 0.0
    %v750 = vrot.slane %v749, 4
    %v751 = vadd.f32 %v749, %v750
    %v752 = vrot.slane %v751, 2
    %v753 = vadd.f32 %v751, %v752
    %v754 = vrot.slane %v753, 1
    %v755 = vadd.f32 %v753, %v754
    %v756 = vsel %vm197, %v727, 0.0
    %v757 = vrot.slane %v756, 4
    %v758 = vadd.f32 %v756, %v757
    %v759 = vrot.slane %v758, 2
    %v760 = vadd.f32 %v758, %v759
    %v761 = vrot.slane %v760, 1
    %v762 = vadd.f32 %v760, %v761
    %v763 = vsel %vm197, %v735, 0.0
    %v764 = vrot.slane %v763, 4
    %v765 = vadd.f32 %v763, %v764
    %v766 = vrot.slane %v765, 2
    %v767 = vadd.f32 %v765, %v766
    %v768 = vrot.slane %v767, 1
    %v769 = vadd.f32 %v767, %v768
    %v770 = vsel %vm197, %v728, 0.0
    %v771 = vrot.slane %v770, 4
    %v772 = vadd.f32 %v770, %v771
    %v773 = vrot.slane %v772, 2
    %v774 = vadd.f32 %v772, %v773
    %v775 = vrot.slane %v774, 1
    %v776 = vadd.f32 %v774, %v775
    %v777 = vsel %vm197, %v736, 0.0
    %v778 = vrot.slane %v777, 4
    %v779 = vadd.f32 %v777, %v778
    %v780 = vrot.slane %v779, 2
    %v781 = vadd.f32 %v779, %v780
    %v782 = vrot.slane %v781, 1
    %v783 = vadd.f32 %v781, %v782
    %v784 = vsel %vm197, %v729, 0.0
    %v785 = vrot.slane %v784, 4
    %v786 = vadd.f32 %v784, %v785
    %v787 = vrot.slane %v786, 2
    %v788 = vadd.f32 %v786, %v787
    %v789 = vrot.slane %v788, 1
    %v790 = vadd.f32 %v788, %v789
    %v791 = vsel %vm197, %v737, 0.0
    %v792 = vrot.slane %v791, 4
    %v793 = vadd.f32 %v791, %v792
    %v794 = vrot.slane %v793, 2
    %v795 = vadd.f32 %v793, %v794
    %v796 = vrot.slane %v795, 1
    %v797 = vadd.f32 %v795, %v796
    %v806 = vcombine.low %v748, %v755
    %v807 = vcombine.low %v762, %v769
    %v808 = vcombine.low %v776, %v783
    %v809 = vcombine.low %v790, %v797
    %v811 = vunpack.c.l.s4 1966171168
    %v812 = vunpack.c.0.s8 %v811
    %v813 = vlaneseq
    %v814 = vshrl.u32 %v813, 7
    %v815 = vsub.s32 %v812, %v814
    %v816 = vrot.slane %v806, %v815
    %v818 = vunpack.c.l.s4 1966171168
    %v819 = vunpack.c.0.s8 %v818
    %v820 = vlaneseq
    %v821 = vshrl.u32 %v820, 7
    %v822 = vsub.s32 %v819, %v821
    %v823 = vrot.slane %v807, %v822
    %v825 = vunpack.c.l.s4 1966171168
    %v826 = vunpack.c.0.s8 %v825
    %v827 = vlaneseq
    %v828 = vshrl.u32 %v827, 7
    %v829 = vsub.s32 %v826, %v828
    %v830 = vrot.slane %v808, %v829
    %v832 = vunpack.c.l.s4 1966171168
    %v833 = vunpack.c.0.s8 %v832
    %v834 = vlaneseq
    %v835 = vshrl.u32 %v834, 7
    %v836 = vsub.s32 %v833, %v835
    %v837 = vrot.slane %v809, %v836
    %v838 = vcombine.low %v816, %v823
    %v839 = vcombine.low %v830, %v837
    %v841 = vunpack.c.l.s4 1966171168
    %v842 = vunpack.c.0.s8 %v841
    %v843 = vlaneseq
    %v844 = vshrl.u32 %v843, 7
    %v845 = vsub.s32 %v842, %v844
    %v846 = vrot.slane %v838, %v845
    %v848 = vunpack.c.l.s4 1966171168
    %v849 = vunpack.c.0.s8 %v848
    %v850 = vlaneseq
    %v851 = vshrl.u32 %v850, 7
    %v852 = vsub.s32 %v849, %v851
    %v853 = vrot.slane %v839, %v852
    %v854 = vcombine.low %v846, %v853
    %v856 = vadd.f32 %v725, %v854
    %857 = vst [vmem:[%s722] ss:$8 sm:$0xf] %v856
    %858 = vst [vmem:[%s722] ss:$8 sm:$0xf0] %v856
    // Predicated region
    $region34: #{tpu_custom_call.1} parent=1 // pred_check
      _
    $region35: #{tpu_custom_call.1} parent=1 // pred_check_branch
      %860 = sbr.rel (0) target = $region37
    $region36: #{tpu_custom_call.1} parent=1 // pred_region
      _
    $region37: #{tpu_custom_call.1} parent=1 // pred_fallthru
      _
    // Predicated region
    $region38: #{tpu_custom_call.1} parent=1 // pred_check
      _
    $region39: #{tpu_custom_call.1} parent=1 // pred_check_branch
      %862 = sbr.rel (0) target = $region41
    $region40: #{tpu_custom_call.1} parent=1 // pred_region
      _
    $region41: #{tpu_custom_call.1} parent=1 // pred_fallthru
      _
    %863 = vsyncpa [#allocation3], 1
    %864 = vsyncpa [#allocation5], 1

</llo_original>
